<compile_context>
chip_gen: v7x
topology: tpu7x:2x2x1
jax: 0.10.0
libtpu: 0.0.40
codegen_flags: <defaults>
</compile_context>

<pallas_src>
import functools

import jax
import jax.numpy as jnp
from jax.experimental import pallas as pl
from jax.experimental.pallas import tpu as pltpu


def _ca_kernel(x_ref, w1t_ref, b1_ref, w2_ref, b2_ref, o_ref, acc_ref,
               *, hw_total, hw_tile, mask_tail):
    # x_ref:   (C, hw_tile)   native dtype tile of one image
    # w1t_ref: (C, mid)       first 1x1 conv weight, transposed
    # b1_ref:  (1, mid)
    # w2_ref:  (C, mid)       second 1x1 conv weight (native layout)
    # b2_ref:  (C, 1)
    # o_ref:   (C, 1)         per-image output
    # acc_ref: (C, 1) f32     running spatial sum (scratch, persists across hw steps)
    hw_idx = pl.program_id(1)

    @pl.when(hw_idx == 0)
    def _():
        acc_ref[...] = jnp.zeros_like(acc_ref)

    x = x_ref[...].astype(jnp.float32)                      # (C, hw_tile)
    if mask_tail:
        # Zero out the padded tail of the last partial block so the mean is unbiased.
        lane = jax.lax.broadcasted_iota(jnp.int32, x.shape, 1) + hw_idx * hw_tile
        x = jnp.where(lane < hw_total, x, 0.0)
    acc_ref[...] += jnp.sum(x, axis=-1, keepdims=True)      # (C, 1)

    @pl.when(hw_idx == pl.num_programs(1) - 1)
    def _():
        pooled = acc_ref[...] * (1.0 / hw_total)             # (C, 1) == global avg pool
        w1t = w1t_ref[...].astype(jnp.float32)               # (C, mid)
        b1 = b1_ref[...].astype(jnp.float32)                 # (1, mid)
        w2 = w2_ref[...].astype(jnp.float32)                 # (C, mid)
        b2 = b2_ref[...].astype(jnp.float32)                 # (C, 1)
        # FC1 + ReLU: h[m] = relu(sum_c w1[m,c]*pooled[c] + b1[m])  -> (1, mid)
        # Done on the VPU (broadcast-mul + sublane reduce): mid is tiny, MXU is wasted.
        h = jnp.sum(w1t * pooled, axis=0, keepdims=True) + b1
        h = jnp.maximum(h, 0.0)
        # FC2: y[c] = sum_m w2[c,m]*h[m] + b2[c]  -> (C, 1)  (lane reduce)
        y = jnp.sum(w2 * h, axis=1, keepdims=True) + b2
        o_ref[...] = y.astype(o_ref.dtype)


def ca_layer(x, w1, b1, w2, b2):
    """x: (N, C, H, W); w1: (mid, C) [1x1 conv weight squeezed]; b1: (mid,);
    w2: (C, mid); b2: (C,).  Returns (N, C, 1, 1) in x.dtype."""
    N, C, H, W = x.shape
    mid = w1.shape[0]
    HW = H * W

    # HW tile: large multiple of 128 (lane-dense, unmasked loads) or the full extent.
    if HW % 128 == 0:
        hw_tile = min(HW, 2048)
    elif HW > 2048:
        hw_tile = 2048                    # multiple of 128; ragged tail masked in-kernel
    else:
        hw_tile = HW                      # full extent is always a legal block
    num_hw = (HW + hw_tile - 1) // hw_tile
    mask_tail = (HW % hw_tile) != 0

    x3 = x.reshape(N, C, HW)                           # native dtype: no wrapper cast
    w1t = jnp.transpose(w1)                            # (C, mid)  -- tiny
    b1r = b1.reshape(1, mid)
    b2c = b2.reshape(C, 1)

    kernel = functools.partial(_ca_kernel, hw_total=HW, hw_tile=hw_tile,
                               mask_tail=mask_tail)

    bytes_accessed = (x3.size * x3.dtype.itemsize
                      + (2 * C * mid + mid + C) * w1.dtype.itemsize
                      + N * C * x.dtype.itemsize)
    cost = pl.CostEstimate(flops=2 * N * C * HW + 4 * N * C * mid,
                           transcendentals=0,
                           bytes_accessed=bytes_accessed)

    y = pl.pallas_call(
        kernel,
        out_shape=jax.ShapeDtypeStruct((N, C, 1), x.dtype),
        grid_spec=pltpu.PrefetchScalarGridSpec(
            num_scalar_prefetch=0,
            grid=(N, num_hw),
            in_specs=[
                pl.BlockSpec((None, C, hw_tile), lambda n, hw: (n, 0, hw)),  # x tile
                pl.BlockSpec((C, mid), lambda n, hw: (0, 0)),                # w1t (resident)
                pl.BlockSpec((1, mid), lambda n, hw: (0, 0)),                # b1
                pl.BlockSpec((C, mid), lambda n, hw: (0, 0)),                # w2
                pl.BlockSpec((C, 1), lambda n, hw: (0, 0)),                  # b2
            ],
            out_specs=pl.BlockSpec((None, C, 1), lambda n, hw: (n, 0, 0)),
            scratch_shapes=[pltpu.VMEM((C, 1), jnp.float32)],
        ),
        compiler_params=pltpu.CompilerParams(
            dimension_semantics=("parallel", "arbitrary"),   # N across cores, HW reduced
        ),
        cost_estimate=cost,
    )(x3, w1t, b1r, w2, b2c)

    return y.reshape(N, C, 1, 1)


def _reference(x, w1, b1, w2, b2):
    # Pure-JAX reference mirroring the PyTorch module.
    pooled = jnp.mean(x.astype(jnp.float32), axis=(2, 3))            # (N, C)
    h = jnp.maximum(pooled @ w1.T + b1, 0.0)                         # (N, mid)
    y = h @ w2.T + b2                                                # (N, C)
    return y[:, :, None, None]


if __name__ == "__main__":
    key = jax.random.PRNGKey(0)
    N, C, H, W = 2, 32, 16, 16
    reduction = 16
    mid = C // reduction

    k_x, k_w1, k_b1, k_w2, k_b2 = jax.random.split(key, 5)
    x = jax.random.normal(k_x, (N, C, H, W), dtype=jnp.float32)
    # Conv2d(C, mid, 1) weight has shape (mid, C, 1, 1) -> squeeze to (mid, C)
    w1 = jax.random.normal(k_w1, (mid, C), dtype=jnp.float32) * 0.1
    b1 = jax.random.normal(k_b1, (mid,), dtype=jnp.float32) * 0.1
    # Conv2d(mid, C, 1) weight -> (C, mid)
    w2 = jax.random.normal(k_w2, (C, mid), dtype=jnp.float32) * 0.1
    b2 = jax.random.normal(k_b2, (C,), dtype=jnp.float32) * 0.1

    out = ca_layer(x, w1, b1, w2, b2)
    out = jax.block_until_ready(out)

    ref = _reference(x, w1, b1, w2, b2)
    assert out.shape == (N, C, 1, 1)
    assert jnp.allclose(out, ref, atol=1e-5, rtol=1e-5), "mismatch vs reference"

    print("KERNEL_OK")
</pallas_src>

<mosaic_0001>
module attributes {stable_mosaic.version = 11 : i64} {
  func.func @_ca_kernel(%arg0: i32, %arg1: i32, %arg2: memref<1x32x256xf32, #tpu.memory_space<vmem>>, %arg3: memref<32x2xf32, #tpu.memory_space<vmem>>, %arg4: memref<1x2xf32, #tpu.memory_space<vmem>>, %arg5: memref<32x2xf32, #tpu.memory_space<vmem>>, %arg6: memref<32x1xf32, #tpu.memory_space<vmem>>, %arg7: memref<1x32x1xf32, #tpu.memory_space<vmem>>, %arg8: memref<32x1xf32, #tpu.memory_space<vmem>>) attributes {dimension_semantics = [#tpu.dimension_semantics<parallel>, #tpu.dimension_semantics<arbitrary>], iteration_bounds = array<i64: 2, 1>, scalar_prefetch = 0 : i64, scratch_operands = 1 : i64, tpu.core_type = #tpu.core_type<tc>, window_params = [{transform_indices = @transform_0, window_bounds = array<i64: 1, 32, 256>}, {pipeline_mode = #tpu.pipeline_mode<synchronous>, transform_indices = @transform_1, window_bounds = array<i64: 32, 2>}, {pipeline_mode = #tpu.pipeline_mode<synchronous>, transform_indices = @transform_2, window_bounds = array<i64: 1, 2>}, {pipeline_mode = #tpu.pipeline_mode<synchronous>, transform_indices = @transform_3, window_bounds = array<i64: 32, 2>}, {pipeline_mode = #tpu.pipeline_mode<synchronous>, transform_indices = @transform_4, window_bounds = array<i64: 32, 1>}, {transform_indices = @transform_5, window_bounds = array<i64: 1, 32, 1>}]} {
    %c0_i32 = arith.constant 0 : i32
    %0 = arith.cmpi eq, %arg1, %c0_i32 : i32
    %1 = arith.extui %0 : i1 to i32
    %c0_i32_0 = arith.constant 0 : i32
    %2 = arith.cmpi ne, %1, %c0_i32_0 : i32
    scf.if %2 {
      %cst_9 = arith.constant 0.000000e+00 : f32
      %13 = vector.broadcast %cst_9 : f32 to vector<32x1xf32>
      %c0_10 = arith.constant 0 : index
      %c0_11 = arith.constant 0 : index
      %14 = vector.load %arg8[%c0_10, %c0_11] : memref<32x1xf32, #tpu.memory_space<vmem>>, vector<32x1xf32>
      tpu.vector_store %arg8[%c0_10, %c0_11], %13 {strides = array<i32>} : memref<32x1xf32, #tpu.memory_space<vmem>>, vector<32x1xf32>,
    } else {
    }
    %c0 = arith.constant 0 : index
    %c0_1 = arith.constant 0 : index
    %c0_2 = arith.constant 0 : index
    %3 = vector.load %arg2[%c0, %c0_1, %c0_2] : memref<1x32x256xf32, #tpu.memory_space<vmem>>, vector<1x32x256xf32>
    %4 = vector.shape_cast %3 : vector<1x32x256xf32> to vector<32x256xf32>
    %c0_3 = arith.constant 0 : index
    %c0_4 = arith.constant 0 : index
    %5 = vector.load %arg8[%c0_3, %c0_4] : memref<32x1xf32, #tpu.memory_space<vmem>>, vector<32x1xf32>
    %cst = arith.constant dense<0.000000e+00> : vector<32xf32>
    %6 = vector.multi_reduction <add>, %4, %cst [1] : vector<32x256xf32> to vector<32xf32>
    %7 = vector.shape_cast %6 : vector<32xf32> to vector<32x1xf32>
    %8 = arith.addf %5, %7 : vector<32x1xf32>
    %c0_5 = arith.constant 0 : index
    %c0_6 = arith.constant 0 : index
    %9 = vector.load %arg8[%c0_5, %c0_6] : memref<32x1xf32, #tpu.memory_space<vmem>>, vector<32x1xf32>
    tpu.vector_store %arg8[%c0_5, %c0_6], %8 {strides = array<i32>} : memref<32x1xf32, #tpu.memory_space<vmem>>, vector<32x1xf32>,
    %c0_i32_7 = arith.constant 0 : i32
    %10 = arith.cmpi eq, %arg1, %c0_i32_7 : i32
    %11 = arith.extui %10 : i1 to i32
    %c0_i32_8 = arith.constant 0 : i32
    %12 = arith.cmpi ne, %11, %c0_i32_8 : i32
    scf.if %12 {
      %c0_9 = arith.constant 0 : index
      %c0_10 = arith.constant 0 : index
      %13 = vector.load %arg8[%c0_9, %c0_10] : memref<32x1xf32, #tpu.memory_space<vmem>>, vector<32x1xf32>
      %cst_11 = arith.constant 3.906250e-03 : f32
      %14 = vector.broadcast %cst_11 : f32 to vector<32x1xf32>
      %15 = arith.mulf %13, %14 : vector<32x1xf32>
      %c0_12 = arith.constant 0 : index
      %c0_13 = arith.constant 0 : index
      %16 = vector.load %arg3[%c0_12, %c0_13] : memref<32x2xf32, #tpu.memory_space<vmem>>, vector<32x2xf32>
      %c0_14 = arith.constant 0 : index
      %c0_15 = arith.constant 0 : index
      %17 = vector.load %arg4[%c0_14, %c0_15] : memref<1x2xf32, #tpu.memory_space<vmem>>, vector<1x2xf32>
      %c0_16 = arith.constant 0 : index
      %c0_17 = arith.constant 0 : index
      %18 = vector.load %arg5[%c0_16, %c0_17] : memref<32x2xf32, #tpu.memory_space<vmem>>, vector<32x2xf32>
      %c0_18 = arith.constant 0 : index
      %c0_19 = arith.constant 0 : index
      %19 = vector.load %arg6[%c0_18, %c0_19] : memref<32x1xf32, #tpu.memory_space<vmem>>, vector<32x1xf32>
      %20 = vector.broadcast %15 : vector<32x1xf32> to vector<32x2xf32>
      %21 = arith.mulf %16, %20 : vector<32x2xf32>
      %cst_20 = arith.constant dense<0.000000e+00> : vector<2xf32>
      %22 = vector.multi_reduction <add>, %21, %cst_20 [0] : vector<32x2xf32> to vector<2xf32>
      %23 = vector.shape_cast %22 : vector<2xf32> to vector<1x2xf32>
      %24 = arith.addf %23, %17 : vector<1x2xf32>
      %cst_21 = arith.constant 0.000000e+00 : f32
      %25 = vector.broadcast %cst_21 : f32 to vector<1x2xf32>
      %26 = arith.maximumf %24, %25 : vector<1x2xf32>
      %27 = vector.broadcast %26 : vector<1x2xf32> to vector<32x2xf32>
      %28 = arith.mulf %18, %27 : vector<32x2xf32>
      %cst_22 = arith.constant dense<0.000000e+00> : vector<32xf32>
      %29 = vector.multi_reduction <add>, %28, %cst_22 [1] : vector<32x2xf32> to vector<32xf32>
      %30 = vector.shape_cast %29 : vector<32xf32> to vector<32x1xf32>
      %31 = arith.addf %30, %19 : vector<32x1xf32>
      %c0_23 = arith.constant 0 : index
      %c0_24 = arith.constant 0 : index
      %c0_25 = arith.constant 0 : index
      %32 = vector.load %arg7[%c0_23, %c0_24, %c0_25] : memref<1x32x1xf32, #tpu.memory_space<vmem>>, vector<1x32x1xf32>
      %33 = vector.shape_cast %32 : vector<1x32x1xf32> to vector<32x1xf32>
      %34 = vector.shape_cast %31 : vector<32x1xf32> to vector<1x32x1xf32>
      tpu.vector_store %arg7[%c0_23, %c0_24, %c0_25], %34 {strides = array<i32>} : memref<1x32x1xf32, #tpu.memory_space<vmem>>, vector<1x32x1xf32>,
    } else {
    }
    return
  }
  func.func @transform_0(%arg0: i32, %arg1: i32) -> (i32, i32, i32) {
    %c0_i32 = arith.constant 0 : i32
    %c0_i32_0 = arith.constant 0 : i32
    return %arg0, %c0_i32, %arg1 : i32, i32, i32
  }
  func.func @transform_1(%arg0: i32, %arg1: i32) -> (i32, i32) {
    %c0_i32 = arith.constant 0 : i32
    %c0_i32_0 = arith.constant 0 : i32
    %c0_i32_1 = arith.constant 0 : i32
    return %c0_i32, %c0_i32_0 : i32, i32
  }
  func.func @transform_2(%arg0: i32, %arg1: i32) -> (i32, i32) {
    %c0_i32 = arith.constant 0 : i32
    %c0_i32_0 = arith.constant 0 : i32
    %c0_i32_1 = arith.constant 0 : i32
    return %c0_i32, %c0_i32_0 : i32, i32
  }
  func.func @transform_3(%arg0: i32, %arg1: i32) -> (i32, i32) {
    %c0_i32 = arith.constant 0 : i32
    %c0_i32_0 = arith.constant 0 : i32
    %c0_i32_1 = arith.constant 0 : i32
    return %c0_i32, %c0_i32_0 : i32, i32
  }
  func.func @transform_4(%arg0: i32, %arg1: i32) -> (i32, i32) {
    %c0_i32 = arith.constant 0 : i32
    %c0_i32_0 = arith.constant 0 : i32
    %c0_i32_1 = arith.constant 0 : i32
    return %c0_i32, %c0_i32_0 : i32, i32
  }
  func.func @transform_5(%arg0: i32, %arg1: i32) -> (i32, i32, i32) {
    %c0_i32 = arith.constant 0 : i32
    %c0_i32_0 = arith.constant 0 : i32
    %c0_i32_1 = arith.constant 0 : i32
    return %arg0, %c0_i32, %c0_i32_0 : i32, i32, i32
  }
}

</mosaic_0001>

<llo_original>
// kernel: tpu_custom_call.1
$region0: #{tpu_custom_call.1}
  #allocation0 [shape = 'u32[]', space=smem, size = 0x4, offset = 0x4, fixed_abs, tag = 'smem constant byte address 0x4 - core index']
  #allocation1 [shape = 'u32[144,128]{1,0:T(1,128)}', space=vmem, size = 0x12000, scoped, tag = 'internal scratch']
  #allocation2 [shape = 'f32[32,1]{1,0:T(8,128)}', space=vmem, size = 0x4000, scoped, tag = 'scratch operand']
  %s0 = inlined_call_operand.hbm [shape: f32[2,32,256], index: 0, kind: input, shape index: {}]
  %s1 = inlined_call_operand.vmem [shape: f32[32,2], index: 1, kind: input, shape index: {}]
  %s2 = inlined_call_operand.vmem [shape: f32[1,2], index: 2, kind: input, shape index: {}]
  %s3 = inlined_call_operand.vmem [shape: f32[32,2], index: 3, kind: input, shape index: {}]
  %s4 = inlined_call_operand.vmem [shape: f32[32,1], index: 4, kind: input, shape index: {}]
  %s5 = inlined_call_operand.vmem [shape: f32[2,32,1], index: 5, kind: output, shape index: {}]
  %s6 = sld [smem:[#allocation0]]
  $region65: #{tpu_custom_call.1} parent=0
    _
  %s8 = ssub.s32 1, %s6
  %s9 = scalar_select 0, %s8, %s6
  $region1: #{tpu_custom_call.1} parent=0
    #allocation3 [shape = 'u8[65536]{0}', space=vmem, size = 0x10000, scoped, tag = 'input window, operand 0']
    #allocation4 [shape = 's32[2]{0}', space=sflag, size = 0x8, scoped, tag = 'scoped memory for tpu_custom_call.1']
    %10 = vsyncpa [#allocation4], 0
    %s11 = scalar_lea.sflag [#allocation4], 1
    %12 = vsyncpa %s11, 0
    loop: start=0, step=1, limit=4
    $region2: #{tpu_custom_call.1} parent=1 // loop_pre_header
      _
    $region3: #{tpu_custom_call.1} parent=1 // loop_header
      %s14 = sphi 0, %s18
      %p15 = scmp.ge.s32.totalorder %s14, 4
      %s21 = sphi 0, %s33
      %s22 = sphi 0, %s29
      %s23 = sphi 0, %s21
      %s24 = sphi 0, %s22
      %s25 = sphi 0, %s23
      %s26 = sphi 0, %s24
      %s38 = sphi 0, %s40
      %s41 = sphi 0, %s38
      %s42 = sphi 0, %s41
      %s58 = sphi 0, %s42
      %s62 = sphi 0, %s62
      %s64 = sphi 0, %s62
      %s65 = sphi 0, %s64
      %s79 = sphi 0, %s65
      %s83 = sphi 0, %s83
      %s85 = sphi 0, %s83
      %s86 = sphi 0, %s85
      %s100 = sphi 0, %s86
      %s104 = sphi 0, %s104
      %s106 = sphi 0, %s104
      %s107 = sphi 0, %s106
      %s121 = sphi 0, %s107
      %s125 = sphi 0, %s125
      %s127 = sphi 0, %s125
      %s128 = sphi 0, %s127
      %s142 = sphi 0, %s128
      %s148 = sphi 0, %s150
      %s151 = sphi 0, %s148
      %s152 = sphi 0, %s151
      %s168 = sphi 0, %s152
    $region4: #{tpu_custom_call.1} parent=1 // loop_header_branch
      %17 = sbr.rel (%p15) target = $region8
    $region5: #{tpu_custom_call.1} parent=1 // loop_body
      %s19 = ssub.s32 %s14, 1
      %s20 = ssub.s32 %s14, 2
      %s27 = sadd.s32 1, %s22
      %p28 = scmp.ge.s32.totalorder %s27, 1
      %s29 = scalar_select %p28, 0, %s27
      %s30 = sadd.s32 1, %s21
      %s31 = scalar_select %p28, %s30, %s21
      %p32 = scmp.ge.s32.totalorder %s31, 2
      %s33 = scalar_select %p32, 0, %s31
      %s34 = ssub.s32 %s21, %s33
      %s35 = ssub.s32 %s22, %s29
      %s36 = sor.u32 %s34, %s35
      %p37 = scmp.eq.s32.totalorder %s36, 0
      %s39 = sadd.s32 %s38, 1
      %s40 = scalar_select %p37, %s38, %s39
      %p43 = pneg %p37
      %p44 = scmp.eq.s32.totalorder %s14, 1
      %p45 = por %p43, %p44
      %p46 = scmp.ne.s32.totalorder %s38, %s41
      %p47 = scmp.eq.s32.totalorder %s14, 0
      %p48 = por %p46, %p47
      %p49 = scmp.ne.s32.totalorder %s38, %s41
      %p50 = scmp.eq.s32.totalorder %s19, 1
      %p51 = por %p49, %p50
      %p52 = scmp.ne.s32.totalorder %s41, %s42
      %p53 = scmp.eq.s32.totalorder %s19, 0
      %p54 = por %p52, %p53
      %p55 = scmp.ne.s32.totalorder %s41, %s42
      %p56 = scmp.eq.s32.totalorder %s20, 1
      %p57 = por %p55, %p56
      %p59 = scmp.ne.s32.totalorder %s42, %s58
      %p60 = scmp.eq.s32.totalorder %s20, 0
      %p61 = por %p59, %p60
      %s63 = sadd.s32 %s62, 1
      %p66 = scmp.eq.s32.totalorder %s14, 1
      %p67 = scmp.ne.s32.totalorder %s62, %s64
      %p68 = scmp.eq.s32.totalorder %s14, 0
      %p69 = por %p67, %p68
      %p70 = scmp.ne.s32.totalorder %s62, %s64
      %p71 = scmp.eq.s32.totalorder %s19, 1
      %p72 = por %p70, %p71
      %p73 = scmp.ne.s32.totalorder %s64, %s65
      %p74 = scmp.eq.s32.totalorder %s19, 0
      %p75 = por %p73, %p74
      %p76 = scmp.ne.s32.totalorder %s64, %s65
      %p77 = scmp.eq.s32.totalorder %s20, 1
      %p78 = por %p76, %p77
      %p80 = scmp.ne.s32.totalorder %s65, %s79
      %p81 = scmp.eq.s32.totalorder %s20, 0
      %p82 = por %p80, %p81
      %s84 = sadd.s32 %s83, 1
      %p87 = scmp.eq.s32.totalorder %s14, 1
      %p88 = scmp.ne.s32.totalorder %s83, %s85
      %p89 = scmp.eq.s32.totalorder %s14, 0
      %p90 = por %p88, %p89
      %p91 = scmp.ne.s32.totalorder %s83, %s85
      %p92 = scmp.eq.s32.totalorder %s19, 1
      %p93 = por %p91, %p92
      %p94 = scmp.ne.s32.totalorder %s85, %s86
      %p95 = scmp.eq.s32.totalorder %s19, 0
      %p96 = por %p94, %p95
      %p97 = scmp.ne.s32.totalorder %s85, %s86
      %p98 = scmp.eq.s32.totalorder %s20, 1
      %p99 = por %p97, %p98
      %p101 = scmp.ne.s32.totalorder %s86, %s100
      %p102 = scmp.eq.s32.totalorder %s20, 0
      %p103 = por %p101, %p102
      %s105 = sadd.s32 %s104, 1
      %p108 = scmp.eq.s32.totalorder %s14, 1
      %p109 = scmp.ne.s32.totalorder %s104, %s106
      %p110 = scmp.eq.s32.totalorder %s14, 0
      %p111 = por %p109, %p110
      %p112 = scmp.ne.s32.totalorder %s104, %s106
      %p113 = scmp.eq.s32.totalorder %s19, 1
      %p114 = por %p112, %p113
      %p115 = scmp.ne.s32.totalorder %s106, %s107
      %p116 = scmp.eq.s32.totalorder %s19, 0
      %p117 = por %p115, %p116
      %p118 = scmp.ne.s32.totalorder %s106, %s107
      %p119 = scmp.eq.s32.totalorder %s20, 1
      %p120 = por %p118, %p119
      %p122 = scmp.ne.s32.totalorder %s107, %s121
      %p123 = scmp.eq.s32.totalorder %s20, 0
      %p124 = por %p122, %p123
      %s126 = sadd.s32 %s125, 1
      %p129 = scmp.eq.s32.totalorder %s14, 1
      %p130 = scmp.ne.s32.totalorder %s125, %s127
      %p131 = scmp.eq.s32.totalorder %s14, 0
      %p132 = por %p130, %p131
      %p133 = scmp.ne.s32.totalorder %s125, %s127
      %p134 = scmp.eq.s32.totalorder %s19, 1
      %p135 = por %p133, %p134
      %p136 = scmp.ne.s32.totalorder %s127, %s128
      %p137 = scmp.eq.s32.totalorder %s19, 0
      %p138 = por %p136, %p137
      %p139 = scmp.ne.s32.totalorder %s127, %s128
      %p140 = scmp.eq.s32.totalorder %s20, 1
      %p141 = por %p139, %p140
      %p143 = scmp.ne.s32.totalorder %s128, %s142
      %p144 = scmp.eq.s32.totalorder %s20, 0
      %p145 = por %p143, %p144
      %s146 = ssub.s32 %s21, %s33
      %p147 = scmp.eq.s32.totalorder %s146, 0
      %s149 = sadd.s32 %s148, 1
      %s150 = scalar_select %p147, %s148, %s149
      %p153 = pneg %p147
      %p154 = scmp.eq.s32.totalorder %s14, 1
      %p155 = por %p153, %p154
      %p156 = scmp.ne.s32.totalorder %s148, %s151
      %p157 = scmp.eq.s32.totalorder %s14, 0
      %p158 = por %p156, %p157
      %p159 = scmp.ne.s32.totalorder %s148, %s151
      %p160 = scmp.eq.s32.totalorder %s19, 1
      %p161 = por %p159, %p160
      %p162 = scmp.ne.s32.totalorder %s151, %s152
      %p163 = scmp.eq.s32.totalorder %s19, 0
      %p164 = por %p162, %p163
      %p165 = scmp.ne.s32.totalorder %s151, %s152
      %p166 = scmp.eq.s32.totalorder %s20, 1
      %p167 = por %p165, %p166
      %p169 = scmp.ne.s32.totalorder %s152, %s168
      %p170 = scmp.eq.s32.totalorder %s20, 0
      %p171 = por %p169, %p170
      %p172 = scmp.le.s32.totalorder 1, %s14
      %p173 = scmp.lt.s32.totalorder %s14, 3
      %p174 = pnand %p172, %p173
      %p175 = pneg %p174
      // Predicated region
      $region9: #{tpu_custom_call.1} parent=5 // pred_check
        _
      $region10: #{tpu_custom_call.1} parent=5 // pred_check_branch
        %177 = sbr.rel (%p174) target = $region12
      $region11: #{tpu_custom_call.1} parent=5 // pred_region
        %s178 = ssub.s32 %s14, 1
        // Predicated region
        $region13: #{tpu_custom_call.1} parent=11 // pred_check
          %p179 = pneg %p75
        $region14: #{tpu_custom_call.1} parent=11 // pred_check_branch
          %181 = sbr.rel (%p179) target = $region16
        $region15: #{tpu_custom_call.1} parent=11 // pred_region
          _
        $region16: #{tpu_custom_call.1} parent=11 // pred_fallthru
          _
        // Predicated region
        $region17: #{tpu_custom_call.1} parent=11 // pred_check
          %p182 = pneg %p96
        $region18: #{tpu_custom_call.1} parent=11 // pred_check_branch
          %184 = sbr.rel (%p182) target = $region20
        $region19: #{tpu_custom_call.1} parent=11 // pred_region
          _
        $region20: #{tpu_custom_call.1} parent=11 // pred_fallthru
          _
        // Predicated region
        $region21: #{tpu_custom_call.1} parent=11 // pred_check
          %p185 = pneg %p117
        $region22: #{tpu_custom_call.1} parent=11 // pred_check_branch
          %187 = sbr.rel (%p185) target = $region24
        $region23: #{tpu_custom_call.1} parent=11 // pred_region
          _
        $region24: #{tpu_custom_call.1} parent=11 // pred_fallthru
          _
        // Predicated region
        $region25: #{tpu_custom_call.1} parent=11 // pred_check
          %p188 = pneg %p138
        $region26: #{tpu_custom_call.1} parent=11 // pred_check_branch
          %190 = sbr.rel (%p188) target = $region28
        $region27: #{tpu_custom_call.1} parent=11 // pred_region
          _
        $region28: #{tpu_custom_call.1} parent=11 // pred_fallthru
          _
      $region12: #{tpu_custom_call.1} parent=5 // pred_fallthru
        _
      %p191 = scmp.lt.s32.totalorder %s14, 2
      // Predicated region
      $region29: #{tpu_custom_call.1} parent=5 // pred_check
        %p192 = pneg %p191
      $region30: #{tpu_custom_call.1} parent=5 // pred_check_branch
        %194 = sbr.rel (%p192) target = $region32
      $region31: #{tpu_custom_call.1} parent=5 // pred_region
        // Predicated region
        $region33: #{tpu_custom_call.1} parent=31 // pred_check
          %p195 = pneg %p48
        $region34: #{tpu_custom_call.1} parent=31 // pred_check_branch
          %197 = sbr.rel (%p195) target = $region36
        $region35: #{tpu_custom_call.1} parent=31 // pred_region
          %s198 = sand.u32 %s38, 1
          %s199 = scalar_lea.sflag [#allocation4], %s198
          %s200 = sand.u32 %s38, 1
          %s201 = smul.addr %s200, 64
          %s202 = scalar_lea.vmem [#allocation3], %s201
          %s203 = smul.u32 2, %s22
          %s205 = ssub.s32 1024, 1024
          %206 = vsyncadd %s199, %s205
          %s207 = smul.addr %s21, 8
          %s208 = sadd.s32 %s203, %s207
          %s209 = smul.addr %s208, 128
          %s210 = scalar_lea.hbm %s0, %s209
          %s211 = sshll.u32 %s202, 4
          %s212 = int_to_ptr.vmem [resolvable:$true] %s211
          %217 = dma.hbm_to_vmem [thread:$0]  %s210, 1024, %s212, %s199, 256, 256, 16
        $region36: #{tpu_custom_call.1} parent=31 // pred_fallthru
          _
      $region32: #{tpu_custom_call.1} parent=5 // pred_fallthru
        _
      %p218 = scmp.le.s32.totalorder 1, %s14
      %p219 = scmp.lt.s32.totalorder %s14, 3
      %p220 = pnand %p218, %p219
      %p221 = pneg %p220
      // Predicated region
      $region37: #{tpu_custom_call.1} parent=5 // pred_check
        _
      $region38: #{tpu_custom_call.1} parent=5 // pred_check_branch
        %223 = sbr.rel (%p220) target = $region40
      $region39: #{tpu_custom_call.1} parent=5 // pred_region
        %s224 = ssub.s32 %s14, 1
        %s225 = sand.u32 %s41, 1
        %s226 = scalar_lea.sflag [#allocation4], %s225
        %s227 = sand.u32 %s41, 1
        %s228 = smul.addr %s227, 64
        %s229 = scalar_lea.vmem [#allocation3], %s228
        // Predicated region
        $region41: #{tpu_custom_call.1} parent=39 // pred_check
          %p230 = pneg %p54
        $region42: #{tpu_custom_call.1} parent=39 // pred_check_branch
          %232 = sbr.rel (%p230) target = $region44
        $region43: #{tpu_custom_call.1} parent=39 // pred_region
          %233 = dma.done %s226, 1024
        $region44: #{tpu_custom_call.1} parent=39 // pred_fallthru
          _
        %s234 = sand.u32 %s41, 1
        %s235 = scalar_lea.sflag [#allocation4], %s234
        %s236 = sand.u32 %s41, 1
        %s237 = smul.addr %s236, 64
        %s238 = scalar_lea.vmem [#allocation3], %s237
        %p239 = pneg %p54
        %p240 = pneg %p51
        %p241 = pneg %p75
        %p242 = pneg %p72
        %p243 = pneg %p96
        %p244 = pneg %p93
        %p245 = pneg %p117
        %p246 = pneg %p114
        %p247 = pneg %p138
        %p248 = pneg %p135
        %p249 = pneg %p164
        %p250 = pneg %p161
        %p251 = scmp.lt.s32.totalorder %s23, 1
        %s252 = scalar_select %p251, %s23, 1
        %s253 = smul.addr %s252, 4
        %s254 = smul.addr %s253, 8
        %s255 = scalar_lea.vmem %s5, %s254
        %s256 = smul.u32 2, %s24
        %p257 = scmp.lt.s32.totalorder %s23, 1
        %s258 = scalar_select %p257, %s23, 1
        %s259 = smul.addr %s258, 4
        %s260 = smul.addr %s259, 8
        %s261 = scalar_lea.vmem %s5, %s260
        %p262 = scmp.eq.s32.totalorder %s24, 0
        // Predicated region
        $region45: #{tpu_custom_call.1} parent=39 // pred_check
          %p263 = pneg %p262
        $region46: #{tpu_custom_call.1} parent=39 // pred_check_branch
          %265 = sbr.rel (%p263) target = $region48
        $region47: #{tpu_custom_call.1} parent=39 // pred_region
          %vm266 = vcmask 7168
          %267 = vst.msk [vmem:[#allocation2] sm:$0xff] %vm266, 0.0
          %268 = vst.msk [vmem:[#allocation2 + $0x8] sm:$0xff] %vm266, 0.0
          %269 = vst.msk [vmem:[#allocation2 + $0x10] sm:$0xff] %vm266, 0.0
          %270 = vst.msk [vmem:[#allocation2 + $0x18] sm:$0xff] %vm266, 0.0
        $region48: #{tpu_custom_call.1} parent=39 // pred_fallthru
          _
        %v271 = vld [vmem:[%s229] sm:$0xff]
        %v272 = vld [vmem:[%s229 + $0x8] sm:$0xff]
        %v273 = vld [vmem:[%s229 + $0x10] sm:$0xff]
        %v274 = vld [vmem:[%s229 + $0x18] sm:$0xff]
        %v275 = vld [vmem:[%s229 + $0x20] sm:$0xff]
        %v276 = vld [vmem:[%s229 + $0x28] sm:$0xff]
        %v277 = vld [vmem:[%s229 + $0x30] sm:$0xff]
        %v278 = vld [vmem:[%s229 + $0x38] sm:$0xff]
        %v279 = vld [vmem:[#allocation2] sm:$0xff]
        %v280 = vld [vmem:[#allocation2 + $0x8] sm:$0xff]
        %v281 = vld [vmem:[#allocation2 + $0x10] sm:$0xff]
        %v282 = vld [vmem:[#allocation2 + $0x18] sm:$0xff]
        %v283 = vadd.f32 %v271, %v272
        %284 = vadd.xlane.f32.xlu0 %v283
        %v285 = vpop.xlane.xlu0 %284
        %v286 = vadd.f32 %v273, %v274
        %287 = vadd.xlane.f32.xlu0 %v286
        %v288 = vpop.xlane.xlu0 %287
        %v289 = vadd.f32 %v275, %v276
        %290 = vadd.xlane.f32.xlu0 %v289
        %v291 = vpop.xlane.xlu0 %290
        %v292 = vadd.f32 %v277, %v278
        %293 = vadd.xlane.f32.xlu0 %v292
        %v294 = vpop.xlane.xlu0 %293
        %v295 = vadd.f32 %v279, %v285
        %v296 = vadd.f32 %v280, %v288
        %v297 = vadd.f32 %v281, %v291
        %v298 = vadd.f32 %v282, %v294
        %vm299 = vcmask 7168
        %300 = vst.msk [vmem:[#allocation2] sm:$0xff] %vm299, %v295
        %301 = vst.msk [vmem:[#allocation2 + $0x8] sm:$0xff] %vm299, %v296
        %302 = vst.msk [vmem:[#allocation2 + $0x10] sm:$0xff] %vm299, %v297
        %303 = vst.msk [vmem:[#allocation2 + $0x18] sm:$0xff] %vm299, %v298
        // Predicated region
        $region49: #{tpu_custom_call.1} parent=39 // pred_check
          %p304 = pneg %p262
        $region50: #{tpu_custom_call.1} parent=39 // pred_check_branch
          %306 = sbr.rel (%p304) target = $region52
        $region51: #{tpu_custom_call.1} parent=39 // pred_region
          %v307 = vld [vmem:[#allocation2] sm:$0xff]
          %v308 = vld [vmem:[#allocation2 + $0x8] sm:$0xff]
          %v309 = vld [vmem:[#allocation2 + $0x10] sm:$0xff]
          %v310 = vld [vmem:[#allocation2 + $0x18] sm:$0xff]
          %v311 = vmul.f32 %v307, 0.00390625
          %v312 = vmul.f32 %v308, 0.00390625
          %v313 = vmul.f32 %v309, 0.00390625
          %v314 = vmul.f32 %v310, 0.00390625
          %v315 = vld [vmem:[%s1] sm:$0xff]
          %v316 = vld [vmem:[%s1 + $0x8] sm:$0xff]
          %v317 = vld [vmem:[%s1 + $0x10] sm:$0xff]
          %v318 = vld [vmem:[%s1 + $0x18] sm:$0xff]
          %v319 = vld [vmem:[%s2] sm:$0x1]
          %v320 = vld [vmem:[%s3] sm:$0xff]
          %v321 = vld [vmem:[%s3 + $0x8] sm:$0xff]
          %v322 = vld [vmem:[%s3 + $0x10] sm:$0xff]
          %v323 = vld [vmem:[%s3 + $0x18] sm:$0xff]
          %v324 = vld [vmem:[%s4] sm:$0xff]
          %v325 = vld [vmem:[%s4 + $0x8] sm:$0xff]
          %v326 = vld [vmem:[%s4 + $0x10] sm:$0xff]
          %v327 = vld [vmem:[%s4 + $0x18] sm:$0xff]
          %329 = vset.pattern.permute.xlu0 0
          %330 = vperm.xlu0 %329, %v311
          %v331 = vpop.permute.xlu0 %330
          %334 = vset.pattern.permute.xlu0 0
          %335 = vperm.xlu0 %334, %v312
          %v336 = vpop.permute.xlu0 %335
          %339 = vset.pattern.permute.xlu0 0
          %340 = vperm.xlu0 %339, %v313
          %v341 = vpop.permute.xlu0 %340
          %344 = vset.pattern.permute.xlu0 0
          %345 = vperm.xlu0 %344, %v314
          %v346 = vpop.permute.xlu0 %345
          %v348 = vmul.f32 %v315, %v331
          %v349 = vmul.f32 %v316, %v336
          %v350 = vmul.f32 %v317, %v341
          %v351 = vmul.f32 %v318, %v346
          %vm352 = vcmask 15360
          %v353 = vsel %vm352, %v348, 0.0
          %v354 = vsel %vm352, %v349, 0.0
          %v355 = vadd.f32 %v353, %v354
          %v356 = vsel %vm352, %v350, 0.0
          %v357 = vadd.f32 %v355, %v356
          %v358 = vsel %vm352, %v351, 0.0
          %v359 = vadd.f32 %v357, %v358
          %v360 = vrot.slane %v359, 4
          %v361 = vadd.f32 %v359, %v360
          %v362 = vrot.slane %v361, 2
          %v363 = vadd.f32 %v361, %v362
          %v364 = vrot.slane %v363, 1
          %v365 = vadd.f32 %v363, %v364
          %v366 = vadd.f32 %v365, %v319
          %v367 = vmax.f32 %v366, 0.0
          %v368 = vlaneseq
          %v369 = vshrl.u32 %v368, 7
          %v370 = vsub.s32 0, %v369
          %v371 = vrot.slane %v367, %v370
          %v372 = vmul.f32 %v320, %v371
          %v373 = vmul.f32 %v321, %v371
          %v374 = vmul.f32 %v322, %v371
          %v375 = vmul.f32 %v323, %v371
          %v376 = vsel %vm352, %v372, 0.0
          %377 = vadd.xlane.f32.xlu0 %v376
          %v378 = vpop.xlane.xlu0 %377
          %v379 = vsel %vm352, %v373, 0.0
          %380 = vadd.xlane.f32.xlu0 %v379
          %v381 = vpop.xlane.xlu0 %380
          %v382 = vsel %vm352, %v374, 0.0
          %383 = vadd.xlane.f32.xlu0 %v382
          %v384 = vpop.xlane.xlu0 %383
          %v385 = vsel %vm352, %v375, 0.0
          %386 = vadd.xlane.f32.xlu0 %v385
          %v387 = vpop.xlane.xlu0 %386
          %v388 = vadd.f32 %v378, %v324
          %v389 = vadd.f32 %v381, %v325
          %v390 = vadd.f32 %v384, %v326
          %v391 = vadd.f32 %v387, %v327
          %392 = vst.msk [vmem:[%s261] sm:$0xff] %vm299, %v388
          %393 = vst.msk [vmem:[%s261 + $0x8] sm:$0xff] %vm299, %v389
          %394 = vst.msk [vmem:[%s261 + $0x10] sm:$0xff] %vm299, %v390
          %395 = vst.msk [vmem:[%s261 + $0x18] sm:$0xff] %vm299, %v391
        $region52: #{tpu_custom_call.1} parent=39 // pred_fallthru
          _
        %p396 = scmp.lt.s32.totalorder %s23, 1
        %s397 = scalar_select %p396, %s23, 1
        %s398 = smul.addr %s397, 4
        %s399 = smul.addr %s398, 8
        %s400 = scalar_lea.vmem %s5, %s399
        // Predicated region
        $region53: #{tpu_custom_call.1} parent=39 // pred_check
          %p401 = pneg %p161
        $region54: #{tpu_custom_call.1} parent=39 // pred_check_branch
          %403 = sbr.rel (%p401) target = $region56
        $region55: #{tpu_custom_call.1} parent=39 // pred_region
          _
        $region56: #{tpu_custom_call.1} parent=39 // pred_fallthru
          _
      $region40: #{tpu_custom_call.1} parent=5 // pred_fallthru
        _
      %p404 = scmp.le.s32.totalorder 2, %s14
      // Predicated region
      $region57: #{tpu_custom_call.1} parent=5 // pred_check
        %p405 = pneg %p404
      $region58: #{tpu_custom_call.1} parent=5 // pred_check_branch
        %407 = sbr.rel (%p405) target = $region60
      $region59: #{tpu_custom_call.1} parent=5 // pred_region
        %s408 = ssub.s32 %s14, 2
        // Predicated region
        $region61: #{tpu_custom_call.1} parent=59 // pred_check
          %p409 = pneg %p167
        $region62: #{tpu_custom_call.1} parent=59 // pred_check_branch
          %411 = sbr.rel (%p409) target = $region64
        $region63: #{tpu_custom_call.1} parent=59 // pred_region
          %p412 = scmp.lt.s32.totalorder %s25, 1
          %s413 = scalar_select %p412, %s25, 1
          %s414 = smul.addr %s413, 4
          %s415 = smul.addr %s414, 8
          %s416 = scalar_lea.vmem %s5, %s415
        $region64: #{tpu_custom_call.1} parent=59 // pred_fallthru
          _
      $region60: #{tpu_custom_call.1} parent=5 // pred_fallthru
        _
    $region6: #{tpu_custom_call.1} parent=1 // loop_footer
      %s18 = sadd.s32 1, %s14
    $region7: #{tpu_custom_call.1} parent=1 // loop_footer_branch
      %13 = sbr.rel target = $region3
    $region8: #{tpu_custom_call.1} parent=1 // loop_exit
      _
    %417 = vsyncpa [#allocation4], 1
    %s418 = scalar_lea.sflag [#allocation4], 1
    %419 = vsyncpa %s418, 1

</llo_original>
